<compile_context>
chip_gen: v5e
topology: v5e:2x2
jax: 0.10.0
libtpu: 0.0.40
codegen_flags: <defaults>
</compile_context>

<pallas_src>
import math

import jax
import jax.numpy as jnp
from jax.experimental import pallas as pl
from jax.experimental.pallas import tpu as pltpu


def proposal_head_kernel(x_ref, w1_ref, b1_ref, w2_ref, b2_ref, w3_ref, b3_ref, o_ref):
    # x_ref: (Cin, TP) bf16 ; w_i: (Cout_i, Cin_i) bf16 ; b_i: (Cout_i, 1) f32
    x = x_ref[...]
    h1 = jnp.dot(w1_ref[...], x, preferred_element_type=jnp.float32) + b1_ref[...]
    h1 = jnp.maximum(h1, 0.0).astype(jnp.bfloat16)      # bias/ReLU in f32, operands bf16
    h2 = jnp.dot(w2_ref[...], h1, preferred_element_type=jnp.float32) + b2_ref[...]
    h2 = jnp.maximum(h2, 0.0).astype(jnp.bfloat16)
    h3 = jnp.dot(w3_ref[...], h2, preferred_element_type=jnp.float32) + b3_ref[...]
    o_ref[...] = h3.astype(o_ref.dtype)                  # (Cout, TP): lane-dense store


def _round_up(x, m):
    return ((x + m - 1) // m) * m


def _choose_pixel_tile(n_batch, n_pix, target=2048):
    """Pixel-axis tile: multiple of 128 and large (amortize ~0.35us/step pipeline
    overhead), but keep >= 2 parallel grid steps total so both v7x TensorCores
    get work (harmless on v5e/v6e)."""
    tp = min(_round_up(n_pix, 128), _round_up(target, 128))
    if n_batch * pl.cdiv(n_pix, tp) < 2 and n_pix > 128:
        tp = _round_up(pl.cdiv(n_pix, 2), 128)
    return tp


def proposal_head_pallas(x_ncp, w1, b1, w2, b2, w3, b3, *, tp_target=2048):
    """x_ncp: (N, Cin, P) f32; w_i: (Cout_i, Cin_i); b_i: (Cout_i, 1).
    Returns (N, Cout, P) f32."""
    N, Cin, P = x_ncp.shape
    C1, C2, C3 = w1.shape[0], w2.shape[0], w3.shape[0]

    tp = _choose_pixel_tile(N, P, tp_target)
    n_tiles = pl.cdiv(P, tp)
    P_pad = n_tiles * tp
    if P_pad != P:
        x_ncp = jnp.pad(x_ncp, ((0, 0), (0, 0), (0, P_pad - P)))

    # bf16 operands halve the dominant HBM read (x); accumulation stays f32.
    xb = x_ncp.astype(jnp.bfloat16)
    w1b = w1.astype(jnp.bfloat16)
    w2b = w2.astype(jnp.bfloat16)
    w3b = w3.astype(jnp.bfloat16)

    full2d = lambda n, p: (0, 0)
    out = pl.pallas_call(
        proposal_head_kernel,
        out_shape=jax.ShapeDtypeStruct((N, C3, P_pad), jnp.float32),
        grid_spec=pltpu.PrefetchScalarGridSpec(
            num_scalar_prefetch=0,
            grid=(N, n_tiles),
            in_specs=[
                # x: leading batch dim squeezed; kernel sees (Cin, tp)
                pl.BlockSpec((None, Cin, tp), lambda n, p: (n, 0, p)),
                pl.BlockSpec((C1, Cin), full2d),
                pl.BlockSpec((C1, 1), full2d),
                pl.BlockSpec((C2, C1), full2d),
                pl.BlockSpec((C2, 1), full2d),
                pl.BlockSpec((C3, C2), full2d),
                pl.BlockSpec((C3, 1), full2d),
            ],
            out_specs=pl.BlockSpec((None, C3, tp), lambda n, p: (n, 0, p)),
        ),
        compiler_params=pltpu.CompilerParams(
            # both grid axes are independent -> megacore can shard either on v7x;
            # working set is far below the scoped-VMEM default, no vmem_limit needed.
            dimension_semantics=("parallel", "parallel"),
        ),
    )(xb, w1b, b1, w2b, b2, w3b, b3)

    if P_pad != P:
        out = out[:, :, :P]
    return out


def kaiming_normal(key, cout, cin):
    # PyTorch kaiming_normal_ default: fan_in mode, gain sqrt(2); 1x1 conv fan_in = cin
    std = math.sqrt(2.0 / cin)
    return jax.random.normal(key, (cout, cin), dtype=jnp.float32) * std


def proposal_head_forward(vis_input, video_mask, params, *, tp_target=2048):
    """vis_input: (N, C, H, W) NCHW (matching PyTorch).
    video_mask is accepted but unused — PyTorch ProposalHead.forward never applies it."""
    del video_mask
    N, C, H, W = vis_input.shape
    w1, b1, w2, b2, w3, b3 = params
    x = vis_input.reshape(N, C, H * W)  # NCHW -> (N, C, P): pure reshape, no transpose
    out = proposal_head_pallas(x, w1, b1, w2, b2, w3, b3, tp_target=tp_target)
    C_out = w3.shape[0]
    out = out.reshape(N, C_out, H, W)
    # .squeeze(1): drops dim 1 only when it is size 1 (OUTPUT_SIZE == 1), like PyTorch
    if C_out == 1:
        out = out[:, 0]
    return out


if __name__ == "__main__":
    # cfg.INPUT_SIZE = 32, cfg.OUTPUT_SIZE defaults to 1
    INPUT_SIZE = 32
    OUTPUT_SIZE = 1
    N, H, W = 2, 16, 16

    key = jax.random.PRNGKey(0)
    kx, k1, k2, k3 = jax.random.split(key, 4)

    vis_input = jax.random.normal(kx, (N, INPUT_SIZE, H, W), dtype=jnp.float32)
    video_mask = jnp.ones((N, H * W), dtype=jnp.float32)  # unused in forward

    C1, C2 = INPUT_SIZE // 2, INPUT_SIZE // 4
    w1 = kaiming_normal(k1, C1, INPUT_SIZE)
    b1 = jnp.zeros((C1, 1), jnp.float32)
    w2 = kaiming_normal(k2, C2, C1)
    b2 = jnp.zeros((C2, 1), jnp.float32)
    w3 = kaiming_normal(k3, OUTPUT_SIZE, C2)
    b3 = jnp.zeros((OUTPUT_SIZE, 1), jnp.float32)
    params = (w1, b1, w2, b2, w3, b3)

    out = proposal_head_forward(vis_input, video_mask, params)
    out = jax.block_until_ready(out)
    assert out.shape == (N, H, W), out.shape

    # Reference in plain JAX mirroring the kernel numerics
    # (bf16 operands, f32 accumulation via HIGHEST-precision einsum).
    bf = lambda a: a.astype(jnp.bfloat16).astype(jnp.float32)
    hp = jax.lax.Precision.HIGHEST
    xr = bf(vis_input.reshape(N, INPUT_SIZE, H * W))
    h = jnp.einsum("oc,ncp->nop", bf(w1), xr, precision=hp) + b1[None]
    h = bf(jnp.maximum(h, 0.0))
    h = jnp.einsum("oc,ncp->nop", bf(w2), h, precision=hp) + b2[None]
    h = bf(jnp.maximum(h, 0.0))
    ref = jnp.einsum("oc,ncp->nop", bf(w3), h, precision=hp) + b3[None]
    ref = ref.reshape(N, OUTPUT_SIZE, H, W)[:, 0]

    assert jnp.allclose(out, ref, atol=1e-4, rtol=1e-4), float(jnp.max(jnp.abs(out - ref)))
    print("KERNEL_OK")
</pallas_src>

<mosaic_0001>
module attributes {stable_mosaic.version = 11 : i64} {
  func.func @proposal_head_kernel(%arg0: i32, %arg1: i32, %arg2: memref<1x32x256xbf16, #tpu.memory_space<vmem>>, %arg3: memref<16x32xbf16, #tpu.memory_space<vmem>>, %arg4: memref<16x1xf32, #tpu.memory_space<vmem>>, %arg5: memref<8x16xbf16, #tpu.memory_space<vmem>>, %arg6: memref<8x1xf32, #tpu.memory_space<vmem>>, %arg7: memref<1x8xbf16, #tpu.memory_space<vmem>>, %arg8: memref<1x1xf32, #tpu.memory_space<vmem>>, %arg9: memref<1x1x256xf32, #tpu.memory_space<vmem>>) attributes {dimension_semantics = [#tpu.dimension_semantics<parallel>, #tpu.dimension_semantics<parallel>], iteration_bounds = array<i64: 2, 1>, scalar_prefetch = 0 : i64, scratch_operands = 0 : i64, tpu.core_type = #tpu.core_type<tc>, window_params = [{transform_indices = @transform_0, window_bounds = array<i64: 1, 32, 256>}, {pipeline_mode = #tpu.pipeline_mode<synchronous>, transform_indices = @transform_1, window_bounds = array<i64: 16, 32>}, {pipeline_mode = #tpu.pipeline_mode<synchronous>, transform_indices = @transform_2, window_bounds = array<i64: 16, 1>}, {pipeline_mode = #tpu.pipeline_mode<synchronous>, transform_indices = @transform_3, window_bounds = array<i64: 8, 16>}, {pipeline_mode = #tpu.pipeline_mode<synchronous>, transform_indices = @transform_4, window_bounds = array<i64: 8, 1>}, {pipeline_mode = #tpu.pipeline_mode<synchronous>, transform_indices = @transform_5, window_bounds = array<i64: 1, 8>}, {pipeline_mode = #tpu.pipeline_mode<synchronous>, transform_indices = @transform_6, window_bounds = array<i64: 1, 1>}, {transform_indices = @transform_7, window_bounds = array<i64: 1, 1, 256>}]} {
    %c0 = arith.constant 0 : index
    %c0_0 = arith.constant 0 : index
    %c0_1 = arith.constant 0 : index
    %0 = vector.load %arg2[%c0, %c0_0, %c0_1] : memref<1x32x256xbf16, #tpu.memory_space<vmem>>, vector<1x32x256xbf16>
    %1 = vector.shape_cast %0 : vector<1x32x256xbf16> to vector<32x256xbf16>
    %c0_2 = arith.constant 0 : index
    %c0_3 = arith.constant 0 : index
    %2 = vector.load %arg3[%c0_2, %c0_3] : memref<16x32xbf16, #tpu.memory_space<vmem>>, vector<16x32xbf16>
    %cst = arith.constant dense<0.000000e+00> : vector<16x256xf32>
    %3 = tpu.matmul %2, %1, %cst {dimension_numbers = #tpu.dot_dimension_numbers<[1], [0], [0], [1], [0, 0, 1, 1], [], []>} : vector<16x32xbf16>, vector<32x256xbf16>, vector<16x256xf32> -> vector<16x256xf32>
    %c0_4 = arith.constant 0 : index
    %c0_5 = arith.constant 0 : index
    %4 = vector.load %arg4[%c0_4, %c0_5] : memref<16x1xf32, #tpu.memory_space<vmem>>, vector<16x1xf32>
    %5 = vector.broadcast %4 : vector<16x1xf32> to vector<16x256xf32>
    %6 = arith.addf %3, %5 : vector<16x256xf32>
    %cst_6 = arith.constant 0.000000e+00 : f32
    %7 = vector.broadcast %cst_6 : f32 to vector<16x256xf32>
    %8 = arith.maximumf %6, %7 : vector<16x256xf32>
    %9 = arith.truncf %8 : vector<16x256xf32> to vector<16x256xbf16>
    %c0_7 = arith.constant 0 : index
    %c0_8 = arith.constant 0 : index
    %10 = vector.load %arg5[%c0_7, %c0_8] : memref<8x16xbf16, #tpu.memory_space<vmem>>, vector<8x16xbf16>
    %cst_9 = arith.constant dense<0.000000e+00> : vector<8x256xf32>
    %11 = tpu.matmul %10, %9, %cst_9 {dimension_numbers = #tpu.dot_dimension_numbers<[1], [0], [0], [1], [0, 0, 1, 1], [], []>} : vector<8x16xbf16>, vector<16x256xbf16>, vector<8x256xf32> -> vector<8x256xf32>
    %c0_10 = arith.constant 0 : index
    %c0_11 = arith.constant 0 : index
    %12 = vector.load %arg6[%c0_10, %c0_11] : memref<8x1xf32, #tpu.memory_space<vmem>>, vector<8x1xf32>
    %13 = vector.broadcast %12 : vector<8x1xf32> to vector<8x256xf32>
    %14 = arith.addf %11, %13 : vector<8x256xf32>
    %cst_12 = arith.constant 0.000000e+00 : f32
    %15 = vector.broadcast %cst_12 : f32 to vector<8x256xf32>
    %16 = arith.maximumf %14, %15 : vector<8x256xf32>
    %17 = arith.truncf %16 : vector<8x256xf32> to vector<8x256xbf16>
    %c0_13 = arith.constant 0 : index
    %c0_14 = arith.constant 0 : index
    %18 = vector.load %arg7[%c0_13, %c0_14] : memref<1x8xbf16, #tpu.memory_space<vmem>>, vector<1x8xbf16>
    %cst_15 = arith.constant dense<0.000000e+00> : vector<1x256xf32>
    %19 = tpu.matmul %18, %17, %cst_15 {dimension_numbers = #tpu.dot_dimension_numbers<[1], [0], [0], [1], [0, 0, 1, 1], [], []>} : vector<1x8xbf16>, vector<8x256xbf16>, vector<1x256xf32> -> vector<1x256xf32>
    %c0_16 = arith.constant 0 : index
    %c0_17 = arith.constant 0 : index
    %20 = vector.load %arg8[%c0_16, %c0_17] : memref<1x1xf32, #tpu.memory_space<vmem>>, vector<1x1xf32>
    %21 = vector.broadcast %20 : vector<1x1xf32> to vector<1x256xf32>
    %22 = arith.addf %19, %21 : vector<1x256xf32>
    %c0_18 = arith.constant 0 : index
    %c0_19 = arith.constant 0 : index
    %c0_20 = arith.constant 0 : index
    %23 = vector.load %arg9[%c0_18, %c0_19, %c0_20] : memref<1x1x256xf32, #tpu.memory_space<vmem>>, vector<1x1x256xf32>
    %24 = vector.shape_cast %23 : vector<1x1x256xf32> to vector<1x256xf32>
    %25 = vector.shape_cast %22 : vector<1x256xf32> to vector<1x1x256xf32>
    tpu.vector_store %arg9[%c0_18, %c0_19, %c0_20], %25 {strides = array<i32>} : memref<1x1x256xf32, #tpu.memory_space<vmem>>, vector<1x1x256xf32>,
    return
  }
  func.func @transform_0(%arg0: i32, %arg1: i32) -> (i32, i32, i32) {
    %c0_i32 = arith.constant 0 : i32
    %c0_i32_0 = arith.constant 0 : i32
    return %arg0, %c0_i32, %arg1 : i32, i32, i32
  }
  func.func @transform_1(%arg0: i32, %arg1: i32) -> (i32, i32) {
    %c0_i32 = arith.constant 0 : i32
    %c0_i32_0 = arith.constant 0 : i32
    %c0_i32_1 = arith.constant 0 : i32
    return %c0_i32, %c0_i32_0 : i32, i32
  }
  func.func @transform_2(%arg0: i32, %arg1: i32) -> (i32, i32) {
    %c0_i32 = arith.constant 0 : i32
    %c0_i32_0 = arith.constant 0 : i32
    %c0_i32_1 = arith.constant 0 : i32
    return %c0_i32, %c0_i32_0 : i32, i32
  }
  func.func @transform_3(%arg0: i32, %arg1: i32) -> (i32, i32) {
    %c0_i32 = arith.constant 0 : i32
    %c0_i32_0 = arith.constant 0 : i32
    %c0_i32_1 = arith.constant 0 : i32
    return %c0_i32, %c0_i32_0 : i32, i32
  }
  func.func @transform_4(%arg0: i32, %arg1: i32) -> (i32, i32) {
    %c0_i32 = arith.constant 0 : i32
    %c0_i32_0 = arith.constant 0 : i32
    %c0_i32_1 = arith.constant 0 : i32
    return %c0_i32, %c0_i32_0 : i32, i32
  }
  func.func @transform_5(%arg0: i32, %arg1: i32) -> (i32, i32) {
    %c0_i32 = arith.constant 0 : i32
    %c0_i32_0 = arith.constant 0 : i32
    %c0_i32_1 = arith.constant 0 : i32
    return %c0_i32, %c0_i32_0 : i32, i32
  }
  func.func @transform_6(%arg0: i32, %arg1: i32) -> (i32, i32) {
    %c0_i32 = arith.constant 0 : i32
    %c0_i32_0 = arith.constant 0 : i32
    %c0_i32_1 = arith.constant 0 : i32
    return %c0_i32, %c0_i32_0 : i32, i32
  }
  func.func @transform_7(%arg0: i32, %arg1: i32) -> (i32, i32, i32) {
    %c0_i32 = arith.constant 0 : i32
    %c0_i32_0 = arith.constant 0 : i32
    return %arg0, %c0_i32, %arg1 : i32, i32, i32
  }
}

</mosaic_0001>

<llo_original>
// kernel: tpu_custom_call.1
$region0: #{tpu_custom_call.1}
  #allocation0 [shape = 'u32[]', space=smem, size = 0x4, offset = 0x4, fixed_abs, tag = 'smem constant byte address 0x4 - core index']
  #allocation1 [shape = 'u32[72,128]{1,0:T(1,128)}', space=vmem, size = 0x9000, scoped, tag = 'internal scratch']
  #allocation2 [shape = 'f32[1,1]{1,0:T(1,128)S(1)}', space=vmem, size = 0x200, scoped, tag = 'scoped memory for tpu_custom_call.1']
  %s0 = inlined_call_operand.hbm [shape: bf16[2,32,256], index: 0, kind: input, shape index: {}]
  %s1 = inlined_call_operand.vmem [shape: bf16[16,32], index: 1, kind: input, shape index: {}]
  %s2 = inlined_call_operand.vmem [shape: f32[16,1], index: 2, kind: input, shape index: {}]
  %s3 = inlined_call_operand.vmem [shape: bf16[8,16], index: 3, kind: input, shape index: {}]
  %s4 = inlined_call_operand.vmem [shape: f32[8,1], index: 4, kind: input, shape index: {}]
  %s5 = inlined_call_operand.vmem [shape: bf16[1,8], index: 5, kind: input, shape index: {}]
  %s6 = inlined_call_operand.<no memory space> [shape: f32[1,1], index: 6, kind: input, shape index: {}]
  %s7 = inlined_call_operand.hbm [shape: f32[2,1,256], index: 7, kind: output, shape index: {}]
  %s8 = sld [smem:[#allocation0]]
  $region65: #{tpu_custom_call.1} parent=0
    _
  %s10 = ssub.s32 1, %s8
  %s11 = scalar_select 0, %s10, %s8
  %v12 = vstv %s6
  %13 = vst [vmem:[#allocation2] sm:$0x1] %v12
  $region1: #{tpu_custom_call.1} parent=0
    #allocation3 [shape = 'u8[32768]{0}', space=vmem, size = 0x8000, scoped, tag = 'input window, operand 0']
    #allocation4 [shape = 's32[2]{0}', space=sflag, size = 0x8, scoped, tag = 'scoped memory for tpu_custom_call.1']
    #allocation5 [shape = 's32[2]{0}', space=sflag, size = 0x8, scoped, tag = 'scoped memory for tpu_custom_call.1']
    #allocation6 [shape = 'u8[2048]{0}', space=vmem, size = 0x800, scoped, tag = 'output window, operand 0']
    %14 = vsyncpa [#allocation4], 0
    %s15 = scalar_lea.sflag [#allocation4], 1
    %16 = vsyncpa %s15, 0
    %17 = vsyncpa [#allocation5], 0
    %s18 = scalar_lea.sflag [#allocation5], 1
    %19 = vsyncpa %s18, 0
    loop: start=0, step=1, limit=4
    $region2: #{tpu_custom_call.1} parent=1 // loop_pre_header
      _
    $region3: #{tpu_custom_call.1} parent=1 // loop_header
      %s21 = sphi 0, %s25
      %p22 = scmp.ge.s32.totalorder %s21, 4
      %s28 = sphi 0, %s40
      %s29 = sphi 0, %s36
      %s30 = sphi 0, %s28
      %s31 = sphi 0, %s29
      %s32 = sphi 0, %s30
      %s33 = sphi 0, %s31
      %s45 = sphi 0, %s47
      %s48 = sphi 0, %s45
      %s49 = sphi 0, %s48
      %s65 = sphi 0, %s49
      %s69 = sphi 0, %s69
      %s71 = sphi 0, %s69
      %s72 = sphi 0, %s71
      %s86 = sphi 0, %s72
      %s90 = sphi 0, %s90
      %s92 = sphi 0, %s90
      %s93 = sphi 0, %s92
      %s107 = sphi 0, %s93
      %s111 = sphi 0, %s111
      %s113 = sphi 0, %s111
      %s114 = sphi 0, %s113
      %s128 = sphi 0, %s114
      %s132 = sphi 0, %s132
      %s134 = sphi 0, %s132
      %s135 = sphi 0, %s134
      %s149 = sphi 0, %s135
      %s153 = sphi 0, %s153
      %s155 = sphi 0, %s153
      %s156 = sphi 0, %s155
      %s170 = sphi 0, %s156
      %s174 = sphi 0, %s174
      %s176 = sphi 0, %s174
      %s177 = sphi 0, %s176
      %s191 = sphi 0, %s177
      %s199 = sphi 0, %s201
      %s202 = sphi 0, %s199
      %s203 = sphi 0, %s202
      %s219 = sphi 0, %s203
    $region4: #{tpu_custom_call.1} parent=1 // loop_header_branch
      %24 = sbr.rel (%p22) target = $region8
    $region5: #{tpu_custom_call.1} parent=1 // loop_body
      %s26 = ssub.s32 %s21, 1
      %s27 = ssub.s32 %s21, 2
      %s34 = sadd.s32 1, %s29
      %p35 = scmp.ge.s32.totalorder %s34, 1
      %s36 = scalar_select %p35, 0, %s34
      %s37 = sadd.s32 1, %s28
      %s38 = scalar_select %p35, %s37, %s28
      %p39 = scmp.ge.s32.totalorder %s38, 2
      %s40 = scalar_select %p39, 0, %s38
      %s41 = ssub.s32 %s28, %s40
      %s42 = ssub.s32 %s29, %s36
      %s43 = sor.u32 %s41, %s42
      %p44 = scmp.eq.s32.totalorder %s43, 0
      %s46 = sadd.s32 %s45, 1
      %s47 = scalar_select %p44, %s45, %s46
      %p50 = pneg %p44
      %p51 = scmp.eq.s32.totalorder %s21, 1
      %p52 = por %p50, %p51
      %p53 = scmp.ne.s32.totalorder %s45, %s48
      %p54 = scmp.eq.s32.totalorder %s21, 0
      %p55 = por %p53, %p54
      %p56 = scmp.ne.s32.totalorder %s45, %s48
      %p57 = scmp.eq.s32.totalorder %s26, 1
      %p58 = por %p56, %p57
      %p59 = scmp.ne.s32.totalorder %s48, %s49
      %p60 = scmp.eq.s32.totalorder %s26, 0
      %p61 = por %p59, %p60
      %p62 = scmp.ne.s32.totalorder %s48, %s49
      %p63 = scmp.eq.s32.totalorder %s27, 1
      %p64 = por %p62, %p63
      %p66 = scmp.ne.s32.totalorder %s49, %s65
      %p67 = scmp.eq.s32.totalorder %s27, 0
      %p68 = por %p66, %p67
      %s70 = sadd.s32 %s69, 1
      %p73 = scmp.eq.s32.totalorder %s21, 1
      %p74 = scmp.ne.s32.totalorder %s69, %s71
      %p75 = scmp.eq.s32.totalorder %s21, 0
      %p76 = por %p74, %p75
      %p77 = scmp.ne.s32.totalorder %s69, %s71
      %p78 = scmp.eq.s32.totalorder %s26, 1
      %p79 = por %p77, %p78
      %p80 = scmp.ne.s32.totalorder %s71, %s72
      %p81 = scmp.eq.s32.totalorder %s26, 0
      %p82 = por %p80, %p81
      %p83 = scmp.ne.s32.totalorder %s71, %s72
      %p84 = scmp.eq.s32.totalorder %s27, 1
      %p85 = por %p83, %p84
      %p87 = scmp.ne.s32.totalorder %s72, %s86
      %p88 = scmp.eq.s32.totalorder %s27, 0
      %p89 = por %p87, %p88
      %s91 = sadd.s32 %s90, 1
      %p94 = scmp.eq.s32.totalorder %s21, 1
      %p95 = scmp.ne.s32.totalorder %s90, %s92
      %p96 = scmp.eq.s32.totalorder %s21, 0
      %p97 = por %p95, %p96
      %p98 = scmp.ne.s32.totalorder %s90, %s92
      %p99 = scmp.eq.s32.totalorder %s26, 1
      %p100 = por %p98, %p99
      %p101 = scmp.ne.s32.totalorder %s92, %s93
      %p102 = scmp.eq.s32.totalorder %s26, 0
      %p103 = por %p101, %p102
      %p104 = scmp.ne.s32.totalorder %s92, %s93
      %p105 = scmp.eq.s32.totalorder %s27, 1
      %p106 = por %p104, %p105
      %p108 = scmp.ne.s32.totalorder %s93, %s107
      %p109 = scmp.eq.s32.totalorder %s27, 0
      %p110 = por %p108, %p109
      %s112 = sadd.s32 %s111, 1
      %p115 = scmp.eq.s32.totalorder %s21, 1
      %p116 = scmp.ne.s32.totalorder %s111, %s113
      %p117 = scmp.eq.s32.totalorder %s21, 0
      %p118 = por %p116, %p117
      %p119 = scmp.ne.s32.totalorder %s111, %s113
      %p120 = scmp.eq.s32.totalorder %s26, 1
      %p121 = por %p119, %p120
      %p122 = scmp.ne.s32.totalorder %s113, %s114
      %p123 = scmp.eq.s32.totalorder %s26, 0
      %p124 = por %p122, %p123
      %p125 = scmp.ne.s32.totalorder %s113, %s114
      %p126 = scmp.eq.s32.totalorder %s27, 1
      %p127 = por %p125, %p126
      %p129 = scmp.ne.s32.totalorder %s114, %s128
      %p130 = scmp.eq.s32.totalorder %s27, 0
      %p131 = por %p129, %p130
      %s133 = sadd.s32 %s132, 1
      %p136 = scmp.eq.s32.totalorder %s21, 1
      %p137 = scmp.ne.s32.totalorder %s132, %s134
      %p138 = scmp.eq.s32.totalorder %s21, 0
      %p139 = por %p137, %p138
      %p140 = scmp.ne.s32.totalorder %s132, %s134
      %p141 = scmp.eq.s32.totalorder %s26, 1
      %p142 = por %p140, %p141
      %p143 = scmp.ne.s32.totalorder %s134, %s135
      %p144 = scmp.eq.s32.totalorder %s26, 0
      %p145 = por %p143, %p144
      %p146 = scmp.ne.s32.totalorder %s134, %s135
      %p147 = scmp.eq.s32.totalorder %s27, 1
      %p148 = por %p146, %p147
      %p150 = scmp.ne.s32.totalorder %s135, %s149
      %p151 = scmp.eq.s32.totalorder %s27, 0
      %p152 = por %p150, %p151
      %s154 = sadd.s32 %s153, 1
      %p157 = scmp.eq.s32.totalorder %s21, 1
      %p158 = scmp.ne.s32.totalorder %s153, %s155
      %p159 = scmp.eq.s32.totalorder %s21, 0
      %p160 = por %p158, %p159
      %p161 = scmp.ne.s32.totalorder %s153, %s155
      %p162 = scmp.eq.s32.totalorder %s26, 1
      %p163 = por %p161, %p162
      %p164 = scmp.ne.s32.totalorder %s155, %s156
      %p165 = scmp.eq.s32.totalorder %s26, 0
      %p166 = por %p164, %p165
      %p167 = scmp.ne.s32.totalorder %s155, %s156
      %p168 = scmp.eq.s32.totalorder %s27, 1
      %p169 = por %p167, %p168
      %p171 = scmp.ne.s32.totalorder %s156, %s170
      %p172 = scmp.eq.s32.totalorder %s27, 0
      %p173 = por %p171, %p172
      %s175 = sadd.s32 %s174, 1
      %p178 = scmp.eq.s32.totalorder %s21, 1
      %p179 = scmp.ne.s32.totalorder %s174, %s176
      %p180 = scmp.eq.s32.totalorder %s21, 0
      %p181 = por %p179, %p180
      %p182 = scmp.ne.s32.totalorder %s174, %s176
      %p183 = scmp.eq.s32.totalorder %s26, 1
      %p184 = por %p182, %p183
      %p185 = scmp.ne.s32.totalorder %s176, %s177
      %p186 = scmp.eq.s32.totalorder %s26, 0
      %p187 = por %p185, %p186
      %p188 = scmp.ne.s32.totalorder %s176, %s177
      %p189 = scmp.eq.s32.totalorder %s27, 1
      %p190 = por %p188, %p189
      %p192 = scmp.ne.s32.totalorder %s177, %s191
      %p193 = scmp.eq.s32.totalorder %s27, 0
      %p194 = por %p192, %p193
      %s195 = ssub.s32 %s28, %s40
      %s196 = ssub.s32 %s29, %s36
      %s197 = sor.u32 %s195, %s196
      %p198 = scmp.eq.s32.totalorder %s197, 0
      %s200 = sadd.s32 %s199, 1
      %s201 = scalar_select %p198, %s199, %s200
      %p204 = pneg %p198
      %p205 = scmp.eq.s32.totalorder %s21, 1
      %p206 = por %p204, %p205
      %p207 = scmp.ne.s32.totalorder %s199, %s202
      %p208 = scmp.eq.s32.totalorder %s21, 0
      %p209 = por %p207, %p208
      %p210 = scmp.ne.s32.totalorder %s199, %s202
      %p211 = scmp.eq.s32.totalorder %s26, 1
      %p212 = por %p210, %p211
      %p213 = scmp.ne.s32.totalorder %s202, %s203
      %p214 = scmp.eq.s32.totalorder %s26, 0
      %p215 = por %p213, %p214
      %p216 = scmp.ne.s32.totalorder %s202, %s203
      %p217 = scmp.eq.s32.totalorder %s27, 1
      %p218 = por %p216, %p217
      %p220 = scmp.ne.s32.totalorder %s203, %s219
      %p221 = scmp.eq.s32.totalorder %s27, 0
      %p222 = por %p220, %p221
      %p223 = scmp.le.s32.totalorder 1, %s21
      %p224 = scmp.lt.s32.totalorder %s21, 3
      %p225 = pnand %p223, %p224
      %p226 = pneg %p225
      // Predicated region
      $region9: #{tpu_custom_call.1} parent=5 // pred_check
        _
      $region10: #{tpu_custom_call.1} parent=5 // pred_check_branch
        %228 = sbr.rel (%p225) target = $region12
      $region11: #{tpu_custom_call.1} parent=5 // pred_region
        %s229 = ssub.s32 %s21, 1
        // Predicated region
        $region13: #{tpu_custom_call.1} parent=11 // pred_check
          %p230 = pneg %p82
        $region14: #{tpu_custom_call.1} parent=11 // pred_check_branch
          %232 = sbr.rel (%p230) target = $region16
        $region15: #{tpu_custom_call.1} parent=11 // pred_region
          _
        $region16: #{tpu_custom_call.1} parent=11 // pred_fallthru
          _
        // Predicated region
        $region17: #{tpu_custom_call.1} parent=11 // pred_check
          %p233 = pneg %p103
        $region18: #{tpu_custom_call.1} parent=11 // pred_check_branch
          %235 = sbr.rel (%p233) target = $region20
        $region19: #{tpu_custom_call.1} parent=11 // pred_region
          _
        $region20: #{tpu_custom_call.1} parent=11 // pred_fallthru
          _
        // Predicated region
        $region21: #{tpu_custom_call.1} parent=11 // pred_check
          %p236 = pneg %p124
        $region22: #{tpu_custom_call.1} parent=11 // pred_check_branch
          %238 = sbr.rel (%p236) target = $region24
        $region23: #{tpu_custom_call.1} parent=11 // pred_region
          _
        $region24: #{tpu_custom_call.1} parent=11 // pred_fallthru
          _
        // Predicated region
        $region25: #{tpu_custom_call.1} parent=11 // pred_check
          %p239 = pneg %p145
        $region26: #{tpu_custom_call.1} parent=11 // pred_check_branch
          %241 = sbr.rel (%p239) target = $region28
        $region27: #{tpu_custom_call.1} parent=11 // pred_region
          _
        $region28: #{tpu_custom_call.1} parent=11 // pred_fallthru
          _
        // Predicated region
        $region29: #{tpu_custom_call.1} parent=11 // pred_check
          %p242 = pneg %p166
        $region30: #{tpu_custom_call.1} parent=11 // pred_check_branch
          %244 = sbr.rel (%p242) target = $region32
        $region31: #{tpu_custom_call.1} parent=11 // pred_region
          _
        $region32: #{tpu_custom_call.1} parent=11 // pred_fallthru
          _
        // Predicated region
        $region33: #{tpu_custom_call.1} parent=11 // pred_check
          %p245 = pneg %p187
        $region34: #{tpu_custom_call.1} parent=11 // pred_check_branch
          %247 = sbr.rel (%p245) target = $region36
        $region35: #{tpu_custom_call.1} parent=11 // pred_region
          _
        $region36: #{tpu_custom_call.1} parent=11 // pred_fallthru
          _
      $region12: #{tpu_custom_call.1} parent=5 // pred_fallthru
        _
      %p248 = scmp.lt.s32.totalorder %s21, 2
      // Predicated region
      $region37: #{tpu_custom_call.1} parent=5 // pred_check
        %p249 = pneg %p248
      $region38: #{tpu_custom_call.1} parent=5 // pred_check_branch
        %251 = sbr.rel (%p249) target = $region40
      $region39: #{tpu_custom_call.1} parent=5 // pred_region
        // Predicated region
        $region41: #{tpu_custom_call.1} parent=39 // pred_check
          %p252 = pneg %p55
        $region42: #{tpu_custom_call.1} parent=39 // pred_check_branch
          %254 = sbr.rel (%p252) target = $region44
        $region43: #{tpu_custom_call.1} parent=39 // pred_region
          %s255 = sand.u32 %s45, 1
          %s256 = scalar_lea.sflag [#allocation4], %s255
          %s257 = sand.u32 %s45, 1
          %s258 = smul.addr %s257, 32
          %s259 = scalar_lea.vmem [#allocation3], %s258
          %s260 = smul.u32 2, %s29
          %262 = vsyncadd %s256, 0
          %s263 = smul.addr %s28, 8
          %s264 = sadd.s32 %s260, %s263
          %s265 = smul.addr %s264, 4
          %s266 = scalar_lea.hbm %s0, %s265
          %s267 = sshll.u32 %s266, 4
          %s268 = int_to_ptr.hbm [resolvable:$true] %s267
          %s269 = sshll.u32 %s259, 4
          %s270 = int_to_ptr.vmem [resolvable:$true] %s269
          %275 = dma.hbm_to_vmem [thread:$0]  %s268, 512, %s270, %s256, 128, 128, 8
        $region44: #{tpu_custom_call.1} parent=39 // pred_fallthru
          _
      $region40: #{tpu_custom_call.1} parent=5 // pred_fallthru
        _
      %p276 = scmp.le.s32.totalorder 1, %s21
      %p277 = scmp.lt.s32.totalorder %s21, 3
      %p278 = pnand %p276, %p277
      %p279 = pneg %p278
      // Predicated region
      $region45: #{tpu_custom_call.1} parent=5 // pred_check
        _
      $region46: #{tpu_custom_call.1} parent=5 // pred_check_branch
        %281 = sbr.rel (%p278) target = $region48
      $region47: #{tpu_custom_call.1} parent=5 // pred_region
        %s282 = ssub.s32 %s21, 1
        %s283 = sand.u32 %s48, 1
        %s284 = scalar_lea.sflag [#allocation4], %s283
        %s285 = sand.u32 %s48, 1
        %s286 = smul.addr %s285, 32
        %s287 = scalar_lea.vmem [#allocation3], %s286
        // Predicated region
        $region49: #{tpu_custom_call.1} parent=47 // pred_check
          %p288 = pneg %p61
        $region50: #{tpu_custom_call.1} parent=47 // pred_check_branch
          %290 = sbr.rel (%p288) target = $region52
        $region51: #{tpu_custom_call.1} parent=47 // pred_region
          %292 = dma.done %s284, 512
        $region52: #{tpu_custom_call.1} parent=47 // pred_fallthru
          _
        %s293 = sand.u32 %s48, 1
        %s294 = scalar_lea.sflag [#allocation4], %s293
        %s295 = sand.u32 %s48, 1
        %s296 = smul.addr %s295, 32
        %s297 = scalar_lea.vmem [#allocation3], %s296
        %p298 = pneg %p61
        %p299 = pneg %p58
        %p300 = pneg %p82
        %p301 = pneg %p79
        %p302 = pneg %p103
        %p303 = pneg %p100
        %p304 = pneg %p124
        %p305 = pneg %p121
        %p306 = pneg %p145
        %p307 = pneg %p142
        %p308 = pneg %p166
        %p309 = pneg %p163
        %p310 = pneg %p187
        %p311 = pneg %p184
        %p312 = pneg %p215
        %p313 = pneg %p212
        %s314 = sand.u32 %s202, 1
        %s315 = scalar_lea.sflag [#allocation5], %s314
        %s316 = sand.u32 %s202, 1
        %s317 = smul.addr %s316, 2
        %s318 = scalar_lea.vmem [#allocation6], %s317
        %s319 = smul.u32 2, %s31
        %s320 = smul.u32 2, %s31
        %v322 = vld [vmem:[%s287] sm:$0xff]
        %v323 = vld [vmem:[%s287 + $0x8] sm:$0xff]
        %v324 = vld [vmem:[%s287 + $0x10] sm:$0xff]
        %v325 = vld [vmem:[%s287 + $0x18] sm:$0xff]
        %v326 = vld [vmem:[%s1] sm:$0xf]
        %v327 = vld [vmem:[%s1 + $0x4] sm:$0xf]
        %v328 = vld [vmem:[%s2] sm:$0xff]
        %v329 = vld [vmem:[%s2 + $0x8] sm:$0xff]
        %331 = vset.pattern.permute.xlu0 0
        %332 = vperm.xlu0 %331, %v328
        %v333 = vpop.permute.xlu0 %332
        %336 = vset.pattern.permute.xlu0 0
        %337 = vperm.xlu0 %336, %v329
        %v338 = vpop.permute.xlu0 %337
        %v342 = vunpack.c.l.b16 %v326
        %v343 = vunpack.c.l.b16 %v327
        %v344 = vpack.c.b16 %v343, %v342
        %v349 = vunpack.c.l.b16 %v322
        %v350 = vunpack.c.h.b16 %v322
        %v351 = vunpack.c.l.b16 %v323
        %v352 = vunpack.c.h.b16 %v323
        %v353 = vunpack.c.l.b16 %v324
        %v354 = vunpack.c.h.b16 %v324
        %v355 = vunpack.c.l.b16 %v325
        %v356 = vunpack.c.h.b16 %v325
        %v357 = vpack.c.b16 %v351, %v349
        %v358 = vpack.c.b16 %v352, %v350
        %v359 = vpack.c.b16 %v355, %v353
        %v360 = vpack.c.b16 %v356, %v354
        %vm365 = vcmask 261120
        %v367 = vsel %vm365, %v344, 0
        %369 = vmatpush.bf16.msra.mxu0 0
        %370 = vmatpush.bf16.msra.mxu0 0
        %371 = vmatpush.bf16.msra.mxu0 0
        %372 = vmatpush.bf16.msra.mxu0 0
        %373 = vmatpush.bf16.msra.mxu0 0
        %374 = vmatpush.bf16.msra.mxu0 0
        %375 = vmatpush.bf16.msra.mxu0 %v359
        %376 = vmatpush.bf16.msra.mxu0 %v357
        %377 = vmatmul.bf16.gmra.mxu0 %v367
        %v378 = vpop.f32.mrf.mxu0
        %v379 = vadd.f32 %v333, %v378
        %v380 = vpop.f32.mrf.mxu0
        %v381 = vadd.f32 %v338, %v380
        %382 = vdwg.mxu0
        %383 = vmatpush.bf16.msra.mxu0 0
        %384 = vmatpush.bf16.msra.mxu0 0
        %385 = vmatpush.bf16.msra.mxu0 0
        %386 = vmatpush.bf16.msra.mxu0 0
        %387 = vmatpush.bf16.msra.mxu0 0
        %388 = vmatpush.bf16.msra.mxu0 0
        %389 = vmatpush.bf16.msra.mxu0 %v360
        %390 = vmatpush.bf16.msra.mxu0 %v358
        %391 = vmatmul.bf16.gmra.mxu0 %v367
        %v392 = vpop.f32.mrf.mxu0
        %v393 = vadd.f32 %v333, %v392
        %v394 = vpop.f32.mrf.mxu0
        %v395 = vadd.f32 %v338, %v394
        %396 = vdwg.mxu0
        %v397 = vmax.f32 %v379, 0.0
        %v398 = vmax.f32 %v393, 0.0
        %v399 = vmax.f32 %v381, 0.0
        %v400 = vmax.f32 %v395, 0.0
        %v401 = vpack.c.bf16 %v399, %v397
        %v402 = vpack.c.bf16 %v400, %v398
        %v403 = vld [vmem:[%s3] sm:$0xf]
        %v404 = vld [vmem:[%s4] sm:$0xff]
        %406 = vset.pattern.permute.xlu0 0
        %407 = vperm.xlu0 %406, %v404
        %v408 = vpop.permute.xlu0 %407
        %vm410 = vcmask 130048
        %v412 = vsel %vm410, %v403, 0
        %414 = vmatpush.bf16.msra.mxu0 0
        %415 = vmatpush.bf16.msra.mxu0 0
        %416 = vmatpush.bf16.msra.mxu0 0
        %417 = vmatpush.bf16.msra.mxu0 0
        %418 = vmatpush.bf16.msra.mxu0 0
        %419 = vmatpush.bf16.msra.mxu0 0
        %420 = vmatpush.bf16.msra.mxu0 0
        %421 = vmatpush.bf16.msra.mxu0 %v401
        %422 = vmatmul.bf16.gmra.mxu0 %v412
        %v423 = vpop.f32.mrf.mxu0
        %v424 = vadd.f32 %v408, %v423
        %v425 = vpop.f32.mrf.mxu0
        %426 = vdwg.mxu0
        %427 = vmatpush.bf16.msra.mxu0 0
        %428 = vmatpush.bf16.msra.mxu0 0
        %429 = vmatpush.bf16.msra.mxu0 0
        %430 = vmatpush.bf16.msra.mxu0 0
        %431 = vmatpush.bf16.msra.mxu0 0
        %432 = vmatpush.bf16.msra.mxu0 0
        %433 = vmatpush.bf16.msra.mxu0 0
        %434 = vmatpush.bf16.msra.mxu0 %v402
        %435 = vmatmul.bf16.gmra.mxu0 %v412
        %v436 = vpop.f32.mrf.mxu0
        %v437 = vadd.f32 %v408, %v436
        %v438 = vpop.f32.mrf.mxu0
        %439 = vdwg.mxu0
        %v440 = vmax.f32 %v424, 0.0
        %v441 = vmax.f32 %v437, 0.0
        %v442 = vpack.c.bf16 %v440, %v440
        %v443 = vpack.c.bf16 %v441, %v441
        %v444 = vld [vmem:[%s5] sm:$0x1]
        %v445 = vld [vmem:[#allocation2] sm:$0x1]
        %447 = vset.pattern.permute.xlu0 0
        %448 = vperm.xlu0 %447, %v445
        %v449 = vpop.permute.xlu0 %448
        %v451 = vperm.slane %v449, 0
        %vm452 = vcmask 64512
        %v454 = vsel %vm452, %v444, 0
        %vm456 = vcmask 1043456
        %v458 = vsel %vm456, %v442, 0
        %v461 = vsel %vm456, %v443, 0
        %463 = vmatpush.bf16.msra.mxu0 0
        %464 = vmatpush.bf16.msra.mxu0 0
        %465 = vmatpush.bf16.msra.mxu0 0
        %466 = vmatpush.bf16.msra.mxu0 0
        %467 = vmatpush.bf16.msra.mxu0 0
        %468 = vmatpush.bf16.msra.mxu0 0
        %469 = vmatpush.bf16.msra.mxu0 0
        %470 = vmatpush.bf16.msra.mxu0 %v458
        %471 = vmatmul.bf16.gmra.mxu0 %v454
        %v472 = vpop.f32.mrf.mxu0
        %v473 = vadd.f32 %v451, %v472
        %v474 = vpop.f32.mrf.mxu0
        %475 = vdwg.mxu0
        %476 = vmatpush.bf16.msra.mxu0 0
        %477 = vmatpush.bf16.msra.mxu0 0
        %478 = vmatpush.bf16.msra.mxu0 0
        %479 = vmatpush.bf16.msra.mxu0 0
        %480 = vmatpush.bf16.msra.mxu0 0
        %481 = vmatpush.bf16.msra.mxu0 0
        %482 = vmatpush.bf16.msra.mxu0 0
        %483 = vmatpush.bf16.msra.mxu0 %v461
        %484 = vmatmul.bf16.gmra.mxu0 %v454
        %v485 = vpop.f32.mrf.mxu0
        %v486 = vadd.f32 %v451, %v485
        %v487 = vpop.f32.mrf.mxu0
        %488 = vdwg.mxu0
        %v491 = vrot.slane %v486, 7
        %vm492 = vcmask 1040384
        %v493 = vsel %vm492, %v473, %v491
        %v495 = vlaneseq
        %vm496 = vcmp.ge.s32.totalorder %v495, 0
        %vm497 = vcmp.lt.s32.totalorder %v495, 256
        %vm498 = vmand %vm496, %vm497
        %499 = vst.msk [vmem:[%s318] sm:$0x3] %vm498, %v493
        %s500 = sand.u32 %s202, 1
        %s501 = scalar_lea.sflag [#allocation5], %s500
        %s502 = sand.u32 %s202, 1
        %s503 = smul.addr %s502, 2
        %s504 = scalar_lea.vmem [#allocation6], %s503
        // Predicated region
        $region53: #{tpu_custom_call.1} parent=47 // pred_check
          %p505 = pneg %p212
        $region54: #{tpu_custom_call.1} parent=47 // pred_check_branch
          %507 = sbr.rel (%p505) target = $region56
        $region55: #{tpu_custom_call.1} parent=47 // pred_region
          %s508 = smul.u32 2, %s31
          %510 = vsyncadd %s501, 0
          %s511 = smul.addr %s30, 2
          %s512 = sadd.s32 %s508, %s511
          %s513 = scalar_lea.hbm %s7, %s512
          %s515 = sshll.u32 %s504, 4
          %s516 = int_to_ptr.vmem [resolvable:$true] %s515
          %s517 = sshll.u32 %s513, 4
          %s518 = int_to_ptr.hbm [resolvable:$true] %s517
          %520 = dma.vmem_to_hbm [thread:$0]  %s516, 32, %s518, %s501
        $region56: #{tpu_custom_call.1} parent=47 // pred_fallthru
          _
      $region48: #{tpu_custom_call.1} parent=5 // pred_fallthru
        _
      %p521 = scmp.le.s32.totalorder 2, %s21
      // Predicated region
      $region57: #{tpu_custom_call.1} parent=5 // pred_check
        %p522 = pneg %p521
      $region58: #{tpu_custom_call.1} parent=5 // pred_check_branch
        %524 = sbr.rel (%p522) target = $region60
      $region59: #{tpu_custom_call.1} parent=5 // pred_region
        %s525 = ssub.s32 %s21, 2
        // Predicated region
        $region61: #{tpu_custom_call.1} parent=59 // pred_check
          %p526 = pneg %p218
        $region62: #{tpu_custom_call.1} parent=59 // pred_check_branch
          %528 = sbr.rel (%p526) target = $region64
        $region63: #{tpu_custom_call.1} parent=59 // pred_region
          %s529 = sand.u32 %s203, 1
          %s530 = scalar_lea.sflag [#allocation5], %s529
          %s531 = sand.u32 %s203, 1
          %s532 = smul.addr %s531, 2
          %s533 = scalar_lea.vmem [#allocation6], %s532
          %535 = dma.done %s530, 32
        $region64: #{tpu_custom_call.1} parent=59 // pred_fallthru
          _
      $region60: #{tpu_custom_call.1} parent=5 // pred_fallthru
        _
    $region6: #{tpu_custom_call.1} parent=1 // loop_footer
      %s25 = sadd.s32 1, %s21
    $region7: #{tpu_custom_call.1} parent=1 // loop_footer_branch
      %20 = sbr.rel target = $region3
    $region8: #{tpu_custom_call.1} parent=1 // loop_exit
      _
    %536 = vsyncpa [#allocation4], 1
    %s537 = scalar_lea.sflag [#allocation4], 1
    %538 = vsyncpa %s537, 1
    %539 = vsyncpa [#allocation5], 1
    %s540 = scalar_lea.sflag [#allocation5], 1
    %541 = vsyncpa %s540, 1

</llo_original>
